<compile_context>
chip_gen: v6e
topology: v6e:2x2x1
jax: 0.10.0
libtpu: 0.0.40
codegen_flags: <defaults>
</compile_context>

<pallas_src>
import functools

import jax
import jax.numpy as jnp
from jax.experimental import pallas as pl
from jax.experimental.pallas import tpu as pltpu


def _attention_news_kernel(x_ref, w_ref, u_ref, o_ref, *, s_real, flatten_out):
    # x_ref: (TB, S_pad, F)  w_ref: (F, F)  u_ref: (1, F)
    tb, s_pad, f = x_ref.shape
    x = x_ref[...]                                   # compute dtype (bf16)

    # One tall bf16 MXU matmul over all TB*S_pad rows; the collapse is
    # layout-free because s_pad is a multiple of the dtype's sublane pack.
    u = jnp.tanh(jnp.dot(x.reshape(tb * s_pad, f), w_ref[...],
                         preferred_element_type=jnp.float32))        # f32

    # att[b, s] = <u[b, s, :], u_omega>: VPU multiply + lane (XLU) reduce.
    u_row = u_ref[...].astype(jnp.float32)                            # (1, F)
    att = jnp.sum(u.reshape(tb, s_pad, f) * u_row[None], axis=-1)     # (TB, S_pad)

    # Mask padded sequence positions (static no-op when s_real == s_pad).
    if s_real != s_pad:
        pos = jax.lax.broadcasted_iota(jnp.int32, (tb, s_pad), 1)
        att = jnp.where(pos < s_real, att, -jnp.inf)

    # Lane-dense, max-subtracted f32 softmax over the sequence axis.
    att = att - jnp.max(att, axis=-1, keepdims=True)
    e = jnp.exp(att)
    score = e * pl.reciprocal(jnp.sum(e, axis=-1, keepdims=True), approx=True)

    # Weighted sum over S (f32 accumulation on the VPU).
    feat = jnp.sum(x.astype(jnp.float32) * score[:, :, None], axis=1)  # (TB, F)

    if flatten_out:
        # F < 128: present one lane-dense row -> unmasked dense vector stores.
        o_ref[...] = feat.reshape(1, 1, tb * f).astype(o_ref.dtype)
    else:
        o_ref[...] = feat.reshape(1, tb, f).astype(o_ref.dtype)


def _vmem_limit_bytes():
    cap = 64 * 1024 * 1024
    try:
        info = pltpu.get_tpu_info()
        cap = int(getattr(info, "vmem_capacity_bytes", cap))
    except Exception:
        pass
    # Leave headroom below physical/scoped capacity on every generation.
    return int(min(cap * 3 // 4, 96 * 1024 * 1024))


def _choose_block_batch(batch, s_pad, feat, itemsize, vmem_limit):
    """Batch rows per grid step, sized by bytes of x per step.

    ~4 MiB of (bf16) x per step is >1 us of DMA even at v7x's 3.2 TB/s, so the
    ~0.35 us fixed per-step pipeline cost is well amortised; the f32
    temporaries (u, x*score) are ~8x the bf16 block, so also cap against the
    explicit VMEM budget.
    """
    target = min(4 * 1024 * 1024, vmem_limit // 10)
    row_bytes = max(s_pad * feat * itemsize, 1)
    tb = max(1, target // row_bytes)
    tb = min(tb, batch)
    if batch >= 2:
        tb = min(tb, (batch + 1) // 2)   # keep >= 2 grid steps (v7x: 2 TCs)
    return int(max(tb, 1))


def attention_news(x, w_omega, u_omega, *, block_batch=None,
                   compute_dtype=jnp.bfloat16, out_dtype=None):
    """x: (B, S, F), w_omega: (F, F), u_omega: (F, 1) -> (B, F)."""
    B, S, F = x.shape
    assert w_omega.shape == (F, F)
    out_dtype = x.dtype if out_dtype is None else out_dtype

    cdt = jnp.dtype(compute_dtype)
    itemsize = cdt.itemsize
    pack = {4: 8, 2: 16, 1: 32}[itemsize]            # sublane pack for the dtype
    s_pad = ((S + pack - 1) // pack) * pack

    vmem_limit = _vmem_limit_bytes()
    if block_batch is not None:
        tb = int(block_batch)
        nblk = -(-B // tb)
    else:
        tb = _choose_block_batch(B, s_pad, F, itemsize, vmem_limit)
        nblk = -(-B // tb)
        if nblk > 1 and nblk % 2:                    # prefer even #blocks (v7x)
            tb = -(-B // (nblk + 1))
            nblk = -(-B // tb)
    b_pad = nblk * tb

    # bf16 inputs: halve HBM traffic on the dominant read and hit the bf16 MXU;
    # all accumulation inside the kernel stays f32.
    x_c = x.astype(cdt)
    w_c = w_omega.astype(cdt)
    u_row = u_omega.reshape(1, F).astype(jnp.float32)
    if b_pad != B or s_pad != S:
        x_c = jnp.pad(x_c, ((0, b_pad - B), (0, s_pad - S), (0, 0)))

    flatten_out = (F % 128) != 0
    if flatten_out:
        out_shape = jax.ShapeDtypeStruct((nblk, 1, tb * F), out_dtype)
        out_spec = pl.BlockSpec((1, 1, tb * F), lambda b: (b, 0, 0))
    else:
        out_shape = jax.ShapeDtypeStruct((nblk, tb, F), out_dtype)
        out_spec = pl.BlockSpec((1, tb, F), lambda b: (b, 0, 0))

    kernel = functools.partial(_attention_news_kernel,
                               s_real=S, flatten_out=flatten_out)

    def build(single_buffer_weights):
        wkw = dict(pipeline_mode=pl.Buffered(1)) if single_buffer_weights else {}
        in_specs = [
            pl.BlockSpec((tb, s_pad, F), lambda b: (b, 0, 0)),
            # Constant block index -> weights stay resident in VMEM across steps.
            pl.BlockSpec((F, F), lambda b: (0, 0), **wkw),
            pl.BlockSpec((1, F), lambda b: (0, 0), **wkw),
        ]
        return pl.pallas_call(
            kernel,
            out_shape=out_shape,
            grid_spec=pltpu.PrefetchScalarGridSpec(
                num_scalar_prefetch=0,
                grid=(nblk,),
                in_specs=in_specs,
                out_specs=out_spec),
            compiler_params=pltpu.CompilerParams(
                dimension_semantics=("parallel",),
                vmem_limit_bytes=vmem_limit))

    try:
        out = build(True)(x_c, w_c, u_row)
    except Exception:
        # Portability guard: if this JAX build rejects pipeline_mode/Buffered(1),
        # fall back to default double-buffering of the (tiny, resident) weights.
        out = build(False)(x_c, w_c, u_row)

    return out.reshape(b_pad, F)[:B]


def attention_news_ref(x, w_omega, u_omega):
    u = jnp.tanh(x @ w_omega)
    att = u @ u_omega                       # (B, S, 1)
    att = jax.nn.softmax(att, axis=1)
    return jnp.sum(x * att, axis=1)


if __name__ == "__main__":
    B, S, F = 2, 8, 32   # batch, seq, feat_embed_size
    key = jax.random.PRNGKey(0)
    kx, kw, ku = jax.random.split(key, 3)

    x = jax.random.normal(kx, (B, S, F), dtype=jnp.float32)
    # nn.init.uniform_(-0.1, 0.1), deterministic
    w_omega = jax.random.uniform(kw, (F, F), dtype=jnp.float32,
                                 minval=-0.1, maxval=0.1)
    u_omega = jax.random.uniform(ku, (F, 1), dtype=jnp.float32,
                                 minval=-0.1, maxval=0.1)

    out = jax.block_until_ready(attention_news(x, w_omega, u_omega))
    assert out.shape == (B, F)

    # Reference on bf16-quantised inputs isolates kernel error from the
    # (intentional) bf16 input cast; second check bounds total drift vs f32.
    ref_q = attention_news_ref(x.astype(jnp.bfloat16).astype(jnp.float32),
                               w_omega.astype(jnp.bfloat16).astype(jnp.float32),
                               u_omega)
    ref_f32 = attention_news_ref(x, w_omega, u_omega)
    assert jnp.allclose(out, ref_q, atol=1e-2, rtol=1e-2), "kernel mismatch"
    assert jnp.allclose(out, ref_f32, atol=5e-2, rtol=5e-2), "semantics drift"

    print("KERNEL_OK")
</pallas_src>

<mosaic_0001>
module attributes {stable_mosaic.version = 11 : i64} {
  func.func @_attention_news_kernel(%arg0: i32, %arg1: memref<1x16x32xbf16, #tpu.memory_space<vmem>>, %arg2: memref<32x32xbf16, #tpu.memory_space<vmem>>, %arg3: memref<1x32xf32, #tpu.memory_space<vmem>>, %arg4: memref<1x1x32xf32, #tpu.memory_space<vmem>>) attributes {dimension_semantics = [#tpu.dimension_semantics<parallel>], iteration_bounds = array<i64: 2>, scalar_prefetch = 0 : i64, scratch_operands = 0 : i64, tpu.core_type = #tpu.core_type<tc>, window_params = [{transform_indices = @transform_0, window_bounds = array<i64: 1, 16, 32>}, {pipeline_mode = #tpu.pipeline_mode<synchronous>, transform_indices = @transform_1, window_bounds = array<i64: 32, 32>}, {pipeline_mode = #tpu.pipeline_mode<synchronous>, transform_indices = @transform_2, window_bounds = array<i64: 1, 32>}, {transform_indices = @transform_3, window_bounds = array<i64: 1, 1, 32>}]} {
    %c0 = arith.constant 0 : index
    %c0_0 = arith.constant 0 : index
    %c0_1 = arith.constant 0 : index
    %0 = vector.load %arg1[%c0, %c0_0, %c0_1] : memref<1x16x32xbf16, #tpu.memory_space<vmem>>, vector<1x16x32xbf16>
    %1 = vector.shape_cast %0 : vector<1x16x32xbf16> to vector<16x32xbf16>
    %c0_2 = arith.constant 0 : index
    %c0_3 = arith.constant 0 : index
    %2 = vector.load %arg2[%c0_2, %c0_3] : memref<32x32xbf16, #tpu.memory_space<vmem>>, vector<32x32xbf16>
    %cst = arith.constant dense<0.000000e+00> : vector<16x32xf32>
    %3 = tpu.matmul %1, %2, %cst {dimension_numbers = #tpu.dot_dimension_numbers<[1], [0], [0], [1], [0, 0, 1, 1], [], []>} : vector<16x32xbf16>, vector<32x32xbf16>, vector<16x32xf32> -> vector<16x32xf32>
    %4 = math.tanh %3 : vector<16x32xf32>
    %c0_4 = arith.constant 0 : index
    %c0_5 = arith.constant 0 : index
    %5 = vector.load %arg3[%c0_4, %c0_5] : memref<1x32xf32, #tpu.memory_space<vmem>>, vector<1x32xf32>
    %6 = vector.shape_cast %4 : vector<16x32xf32> to vector<1x16x32xf32>
    %7 = vector.shape_cast %5 : vector<1x32xf32> to vector<1x1x32xf32>
    %8 = vector.broadcast %7 : vector<1x1x32xf32> to vector<1x16x32xf32>
    %9 = arith.mulf %6, %8 : vector<1x16x32xf32>
    %cst_6 = arith.constant dense<0.000000e+00> : vector<1x16xf32>
    %10 = vector.multi_reduction <add>, %9, %cst_6 [2] : vector<1x16x32xf32> to vector<1x16xf32>
    %11 = tpu.iota {dimensions = array<i32: 1>} : vector<1x16xi32>
    %c8_i32 = arith.constant 8 : i32
    %12 = vector.broadcast %c8_i32 : i32 to vector<1x16xi32>
    %13 = arith.cmpi slt, %11, %12 : vector<1x16xi32>
    %cst_7 = arith.constant 0xFF800000 : f32
    %14 = vector.broadcast %cst_7 : f32 to vector<1x16xf32>
    %15 = arith.select %13, %10, %14 : vector<1x16xi1>, vector<1x16xf32>
    %cst_8 = arith.constant dense<0xFF800000> : vector<1xf32>
    %16 = vector.multi_reduction <maximumf>, %15, %cst_8 [1] : vector<1x16xf32> to vector<1xf32>
    %17 = vector.shape_cast %16 : vector<1xf32> to vector<1x1xf32>
    %18 = vector.broadcast %17 : vector<1x1xf32> to vector<1x16xf32>
    %19 = arith.subf %15, %18 : vector<1x16xf32>
    %20 = math.exp %19 : vector<1x16xf32>
    %cst_9 = arith.constant dense<0.000000e+00> : vector<1xf32>
    %21 = vector.multi_reduction <add>, %20, %cst_9 [1] : vector<1x16xf32> to vector<1xf32>
    %22 = vector.shape_cast %21 : vector<1xf32> to vector<1x1xf32>
    %23 = tpu.reciprocal %22 {approx = true} : vector<1x1xf32> -> vector<1x1xf32>
    %24 = vector.broadcast %23 : vector<1x1xf32> to vector<1x16xf32>
    %25 = arith.mulf %20, %24 : vector<1x16xf32>
    %26 = arith.extf %0 : vector<1x16x32xbf16> to vector<1x16x32xf32>
    %27 = vector.shape_cast %25 : vector<1x16xf32> to vector<1x16x1xf32>
    %28 = vector.broadcast %27 : vector<1x16x1xf32> to vector<1x16x32xf32>
    %29 = arith.mulf %26, %28 : vector<1x16x32xf32>
    %cst_10 = arith.constant dense<0.000000e+00> : vector<1x32xf32>
    %30 = vector.multi_reduction <add>, %29, %cst_10 [1] : vector<1x16x32xf32> to vector<1x32xf32>
    %31 = vector.shape_cast %30 : vector<1x32xf32> to vector<1x1x32xf32>
    %c0_11 = arith.constant 0 : index
    %c0_12 = arith.constant 0 : index
    %c0_13 = arith.constant 0 : index
    %32 = vector.load %arg4[%c0_11, %c0_12, %c0_13] : memref<1x1x32xf32, #tpu.memory_space<vmem>>, vector<1x1x32xf32>
    tpu.vector_store %arg4[%c0_11, %c0_12, %c0_13], %31 {strides = array<i32>} : memref<1x1x32xf32, #tpu.memory_space<vmem>>, vector<1x1x32xf32>,
    return
  }
  func.func @transform_0(%arg0: i32) -> (i32, i32, i32) {
    %c0_i32 = arith.constant 0 : i32
    %c0_i32_0 = arith.constant 0 : i32
    %c0_i32_1 = arith.constant 0 : i32
    return %arg0, %c0_i32, %c0_i32_0 : i32, i32, i32
  }
  func.func @transform_1(%arg0: i32) -> (i32, i32) {
    %c0_i32 = arith.constant 0 : i32
    %c0_i32_0 = arith.constant 0 : i32
    %c0_i32_1 = arith.constant 0 : i32
    return %c0_i32, %c0_i32_0 : i32, i32
  }
  func.func @transform_2(%arg0: i32) -> (i32, i32) {
    %c0_i32 = arith.constant 0 : i32
    %c0_i32_0 = arith.constant 0 : i32
    %c0_i32_1 = arith.constant 0 : i32
    return %c0_i32, %c0_i32_0 : i32, i32
  }
  func.func @transform_3(%arg0: i32) -> (i32, i32, i32) {
    %c0_i32 = arith.constant 0 : i32
    %c0_i32_0 = arith.constant 0 : i32
    %c0_i32_1 = arith.constant 0 : i32
    return %arg0, %c0_i32, %c0_i32_0 : i32, i32, i32
  }
}

module attributes {stable_mosaic.version = 11 : i64} {
  func.func @_attention_news_kernel(%arg0: i32, %arg1: memref<1x16x32xbf16, #tpu.memory_space<vmem>>, %arg2: memref<32x32xbf16, #tpu.memory_space<vmem>>, %arg3: memref<1x32xf32, #tpu.memory_space<vmem>>, %arg4: memref<1x1x32xf32, #tpu.memory_space<vmem>>) attributes {dimension_semantics = [#tpu.dimension_semantics<parallel>], iteration_bounds = array<i64: 2>, scalar_prefetch = 0 : i64, scratch_operands = 0 : i64, tpu.core_type = #tpu.core_type<tc>, window_params = [{transform_indices = @transform_0, window_bounds = array<i64: 1, 16, 32>}, {pipeline_mode = #tpu.pipeline_mode<synchronous>, transform_indices = @transform_1, window_bounds = array<i64: 32, 32>}, {pipeline_mode = #tpu.pipeline_mode<synchronous>, transform_indices = @transform_2, window_bounds = array<i64: 1, 32>}, {transform_indices = @transform_3, window_bounds = array<i64: 1, 1, 32>}]} {
    %c0 = arith.constant 0 : index
    %c0_0 = arith.constant 0 : index
    %c0_1 = arith.constant 0 : index
    %0 = vector.load %arg1[%c0, %c0_0, %c0_1] : memref<1x16x32xbf16, #tpu.memory_space<vmem>>, vector<1x16x32xbf16>
    %1 = vector.shape_cast %0 : vector<1x16x32xbf16> to vector<16x32xbf16>
    %c0_2 = arith.constant 0 : index
    %c0_3 = arith.constant 0 : index
    %2 = vector.load %arg2[%c0_2, %c0_3] : memref<32x32xbf16, #tpu.memory_space<vmem>>, vector<32x32xbf16>
    %cst = arith.constant dense<0.000000e+00> : vector<16x32xf32>
    %3 = tpu.matmul %1, %2, %cst {dimension_numbers = #tpu.dot_dimension_numbers<[1], [0], [0], [1], [0, 0, 1, 1], [], []>} : vector<16x32xbf16>, vector<32x32xbf16>, vector<16x32xf32> -> vector<16x32xf32>
    %4 = math.tanh %3 : vector<16x32xf32>
    %c0_4 = arith.constant 0 : index
    %c0_5 = arith.constant 0 : index
    %5 = vector.load %arg3[%c0_4, %c0_5] : memref<1x32xf32, #tpu.memory_space<vmem>>, vector<1x32xf32>
    %6 = vector.shape_cast %4 : vector<16x32xf32> to vector<1x16x32xf32>
    %7 = vector.shape_cast %5 : vector<1x32xf32> to vector<1x1x32xf32>
    %8 = vector.broadcast %7 : vector<1x1x32xf32> to vector<1x16x32xf32>
    %9 = arith.mulf %6, %8 : vector<1x16x32xf32>
    %cst_6 = arith.constant dense<0.000000e+00> : vector<1x16xf32>
    %10 = vector.multi_reduction <add>, %9, %cst_6 [2] : vector<1x16x32xf32> to vector<1x16xf32>
    %11 = tpu.iota {dimensions = array<i32: 1>} : vector<1x16xi32>
    %c8_i32 = arith.constant 8 : i32
    %12 = vector.broadcast %c8_i32 : i32 to vector<1x16xi32>
    %13 = arith.cmpi slt, %11, %12 : vector<1x16xi32>
    %cst_7 = arith.constant 0xFF800000 : f32
    %14 = vector.broadcast %cst_7 : f32 to vector<1x16xf32>
    %15 = arith.select %13, %10, %14 : vector<1x16xi1>, vector<1x16xf32>
    %cst_8 = arith.constant dense<0xFF800000> : vector<1xf32>
    %16 = vector.multi_reduction <maximumf>, %15, %cst_8 [1] : vector<1x16xf32> to vector<1xf32>
    %17 = vector.shape_cast %16 : vector<1xf32> to vector<1x1xf32>
    %18 = vector.broadcast %17 : vector<1x1xf32> to vector<1x16xf32>
    %19 = arith.subf %15, %18 : vector<1x16xf32>
    %20 = math.exp %19 : vector<1x16xf32>
    %cst_9 = arith.constant dense<0.000000e+00> : vector<1xf32>
    %21 = vector.multi_reduction <add>, %20, %cst_9 [1] : vector<1x16xf32> to vector<1xf32>
    %22 = vector.shape_cast %21 : vector<1xf32> to vector<1x1xf32>
    %23 = tpu.reciprocal %22 {approx = true} : vector<1x1xf32> -> vector<1x1xf32>
    %24 = vector.broadcast %23 : vector<1x1xf32> to vector<1x16xf32>
    %25 = arith.mulf %20, %24 : vector<1x16xf32>
    %26 = arith.extf %0 : vector<1x16x32xbf16> to vector<1x16x32xf32>
    %27 = vector.shape_cast %25 : vector<1x16xf32> to vector<1x16x1xf32>
    %28 = vector.broadcast %27 : vector<1x16x1xf32> to vector<1x16x32xf32>
    %29 = arith.mulf %26, %28 : vector<1x16x32xf32>
    %cst_10 = arith.constant dense<0.000000e+00> : vector<1x32xf32>
    %30 = vector.multi_reduction <add>, %29, %cst_10 [1] : vector<1x16x32xf32> to vector<1x32xf32>
    %31 = vector.shape_cast %30 : vector<1x32xf32> to vector<1x1x32xf32>
    %c0_11 = arith.constant 0 : index
    %c0_12 = arith.constant 0 : index
    %c0_13 = arith.constant 0 : index
    %32 = vector.load %arg4[%c0_11, %c0_12, %c0_13] : memref<1x1x32xf32, #tpu.memory_space<vmem>>, vector<1x1x32xf32>
    tpu.vector_store %arg4[%c0_11, %c0_12, %c0_13], %31 {strides = array<i32>} : memref<1x1x32xf32, #tpu.memory_space<vmem>>, vector<1x1x32xf32>,
    return
  }
  func.func @transform_0(%arg0: i32) -> (i32, i32, i32) {
    %c0_i32 = arith.constant 0 : i32
    %c0_i32_0 = arith.constant 0 : i32
    %c0_i32_1 = arith.constant 0 : i32
    return %arg0, %c0_i32, %c0_i32_0 : i32, i32, i32
  }
  func.func @transform_1(%arg0: i32) -> (i32, i32) {
    %c0_i32 = arith.constant 0 : i32
    %c0_i32_0 = arith.constant 0 : i32
    %c0_i32_1 = arith.constant 0 : i32
    return %c0_i32, %c0_i32_0 : i32, i32
  }
  func.func @transform_2(%arg0: i32) -> (i32, i32) {
    %c0_i32 = arith.constant 0 : i32
    %c0_i32_0 = arith.constant 0 : i32
    %c0_i32_1 = arith.constant 0 : i32
    return %c0_i32, %c0_i32_0 : i32, i32
  }
  func.func @transform_3(%arg0: i32) -> (i32, i32, i32) {
    %c0_i32 = arith.constant 0 : i32
    %c0_i32_0 = arith.constant 0 : i32
    %c0_i32_1 = arith.constant 0 : i32
    return %arg0, %c0_i32, %c0_i32_0 : i32, i32, i32
  }
}

</mosaic_0001>

<llo_original>
// kernel: tpu_custom_call.1
$region0: #{tpu_custom_call.1}
  #allocation0 [shape = 'u32[]', space=smem, size = 0x4, offset = 0x4, fixed_abs, tag = 'smem constant byte address 0x4 - core index']
  #allocation1 [shape = 'u32[144,128]{1,0:T(1,128)}', space=vmem, size = 0x12000, scoped, tag = 'internal scratch']
  %s0 = inlined_call_operand.hbm [shape: bf16[2,16,32], index: 0, kind: input, shape index: {}]
  %s1 = inlined_call_operand.hbm [shape: bf16[32,32], index: 1, kind: input, shape index: {}]
  %s2 = inlined_call_operand.vmem [shape: f32[1,32], index: 2, kind: input, shape index: {}]
  %s3 = inlined_call_operand.hbm [shape: f32[2,1,32], index: 3, kind: output, shape index: {}]
  %s4 = sld [smem:[#allocation0]]
  $region53: #{tpu_custom_call.1} parent=0
    _
  %s6 = ssub.s32 1, %s4
  %s7 = scalar_select 0, %s6, %s4
  $region1: #{tpu_custom_call.1} parent=0
    #allocation2 [shape = 'u8[8192]{0}', space=vmem, size = 0x2000, scoped, tag = 'input window, operand 0']
    #allocation3 [shape = 's32[2]{0}', space=sflag, size = 0x8, scoped, tag = 'scoped memory for tpu_custom_call.1']
    #allocation4 [shape = 's32[2]{0}', space=sflag, size = 0x8, scoped, tag = 'scoped memory for tpu_custom_call.1']
    #allocation5 [shape = 'u8[8192]{0}', space=vmem, size = 0x2000, scoped, tag = 'input window, operand 1, single buffered']
    #allocation6 [shape = 's32[1]{0}', space=sflag, size = 0x4, scoped, tag = 'scoped memory for tpu_custom_call.1']
    #allocation7 [shape = 'u8[1024]{0}', space=vmem, size = 0x400, scoped, tag = 'output window, operand 0']
    %8 = vsyncpa [#allocation3], 0
    %s9 = scalar_lea.sflag [#allocation3], 1
    %10 = vsyncpa %s9, 0
    %11 = vsyncpa [#allocation6], 0
    %12 = vsyncpa [#allocation4], 0
    %s13 = scalar_lea.sflag [#allocation4], 1
    %14 = vsyncpa %s13, 0
    loop: start=0, step=1, limit=4
    $region2: #{tpu_custom_call.1} parent=1 // loop_pre_header
      _
    $region3: #{tpu_custom_call.1} parent=1 // loop_header
      %s16 = sphi 0, %s20
      %p17 = scmp.ge.s32.totalorder %s16, 4
      %s26 = sphi 0, %s28
      %s29 = sphi 0, %s26
      %s30 = sphi 0, %s29
      %s46 = sphi 0, %s30
      %s50 = sphi 0, %s50
      %s52 = sphi 0, %s50
      %s53 = sphi 0, %s52
      %s67 = sphi 0, %s53
      %s71 = sphi 0, %s71
      %s73 = sphi 0, %s71
      %s74 = sphi 0, %s73
      %s88 = sphi 0, %s74
      %s94 = sphi 0, %s96
      %s97 = sphi 0, %s94
      %s98 = sphi 0, %s97
      %s114 = sphi 0, %s98
    $region4: #{tpu_custom_call.1} parent=1 // loop_header_branch
      %19 = sbr.rel (%p17) target = $region8
    $region5: #{tpu_custom_call.1} parent=1 // loop_body
      %s21 = ssub.s32 %s16, 1
      %s22 = ssub.s32 %s16, 2
      %s23 = sadd.s32 %s16, 1
      %s24 = ssub.s32 %s16, %s23
      %p25 = scmp.eq.s32.totalorder %s24, 0
      %s27 = sadd.s32 %s26, 1
      %s28 = scalar_select %p25, %s26, %s27
      %p31 = pneg %p25
      %p32 = scmp.eq.s32.totalorder %s16, 1
      %p33 = por %p31, %p32
      %p34 = scmp.ne.s32.totalorder %s26, %s29
      %p35 = scmp.eq.s32.totalorder %s16, 0
      %p36 = por %p34, %p35
      %p37 = scmp.ne.s32.totalorder %s26, %s29
      %p38 = scmp.eq.s32.totalorder %s21, 1
      %p39 = por %p37, %p38
      %p40 = scmp.ne.s32.totalorder %s29, %s30
      %p41 = scmp.eq.s32.totalorder %s21, 0
      %p42 = por %p40, %p41
      %p43 = scmp.ne.s32.totalorder %s29, %s30
      %p44 = scmp.eq.s32.totalorder %s22, 1
      %p45 = por %p43, %p44
      %p47 = scmp.ne.s32.totalorder %s30, %s46
      %p48 = scmp.eq.s32.totalorder %s22, 0
      %p49 = por %p47, %p48
      %s51 = sadd.s32 %s50, 1
      %p54 = scmp.eq.s32.totalorder %s16, 1
      %p55 = scmp.ne.s32.totalorder %s50, %s52
      %p56 = scmp.eq.s32.totalorder %s16, 0
      %p57 = por %p55, %p56
      %p58 = scmp.ne.s32.totalorder %s50, %s52
      %p59 = scmp.eq.s32.totalorder %s21, 1
      %p60 = por %p58, %p59
      %p61 = scmp.ne.s32.totalorder %s52, %s53
      %p62 = scmp.eq.s32.totalorder %s21, 0
      %p63 = por %p61, %p62
      %p64 = scmp.ne.s32.totalorder %s52, %s53
      %p65 = scmp.eq.s32.totalorder %s22, 1
      %p66 = por %p64, %p65
      %p68 = scmp.ne.s32.totalorder %s53, %s67
      %p69 = scmp.eq.s32.totalorder %s22, 0
      %p70 = por %p68, %p69
      %s72 = sadd.s32 %s71, 1
      %p75 = scmp.eq.s32.totalorder %s16, 1
      %p76 = scmp.ne.s32.totalorder %s71, %s73
      %p77 = scmp.eq.s32.totalorder %s16, 0
      %p78 = por %p76, %p77
      %p79 = scmp.ne.s32.totalorder %s71, %s73
      %p80 = scmp.eq.s32.totalorder %s21, 1
      %p81 = por %p79, %p80
      %p82 = scmp.ne.s32.totalorder %s73, %s74
      %p83 = scmp.eq.s32.totalorder %s21, 0
      %p84 = por %p82, %p83
      %p85 = scmp.ne.s32.totalorder %s73, %s74
      %p86 = scmp.eq.s32.totalorder %s22, 1
      %p87 = por %p85, %p86
      %p89 = scmp.ne.s32.totalorder %s74, %s88
      %p90 = scmp.eq.s32.totalorder %s22, 0
      %p91 = por %p89, %p90
      %s92 = ssub.s32 %s16, %s23
      %p93 = scmp.eq.s32.totalorder %s92, 0
      %s95 = sadd.s32 %s94, 1
      %s96 = scalar_select %p93, %s94, %s95
      %p99 = pneg %p93
      %p100 = scmp.eq.s32.totalorder %s16, 1
      %p101 = por %p99, %p100
      %p102 = scmp.ne.s32.totalorder %s94, %s97
      %p103 = scmp.eq.s32.totalorder %s16, 0
      %p104 = por %p102, %p103
      %p105 = scmp.ne.s32.totalorder %s94, %s97
      %p106 = scmp.eq.s32.totalorder %s21, 1
      %p107 = por %p105, %p106
      %p108 = scmp.ne.s32.totalorder %s97, %s98
      %p109 = scmp.eq.s32.totalorder %s21, 0
      %p110 = por %p108, %p109
      %p111 = scmp.ne.s32.totalorder %s97, %s98
      %p112 = scmp.eq.s32.totalorder %s22, 1
      %p113 = por %p111, %p112
      %p115 = scmp.ne.s32.totalorder %s98, %s114
      %p116 = scmp.eq.s32.totalorder %s22, 0
      %p117 = por %p115, %p116
      %p118 = scmp.le.s32.totalorder 1, %s16
      %p119 = scmp.lt.s32.totalorder %s16, 3
      %p120 = pnand %p118, %p119
      %p121 = pneg %p120
      // Predicated region
      $region9: #{tpu_custom_call.1} parent=5 // pred_check
        _
      $region10: #{tpu_custom_call.1} parent=5 // pred_check_branch
        %123 = sbr.rel (%p120) target = $region12
      $region11: #{tpu_custom_call.1} parent=5 // pred_region
        %s124 = ssub.s32 %s16, 1
        // Predicated region
        $region13: #{tpu_custom_call.1} parent=11 // pred_check
          %p125 = pneg %p63
        $region14: #{tpu_custom_call.1} parent=11 // pred_check_branch
          %127 = sbr.rel (%p125) target = $region16
        $region15: #{tpu_custom_call.1} parent=11 // pred_region
          %s129 = ssub.s32 256, 256
          %130 = vsyncadd [#allocation6], %s129
          %s131 = sshll.u32 [#allocation5], 4
          %s132 = int_to_ptr.vmem [resolvable:$true] %s131
          %137 = dma.hbm_to_vmem [thread:$0]  %s1, 256, %s132, [#allocation6], 64, 64, 4
        $region16: #{tpu_custom_call.1} parent=11 // pred_fallthru
          _
        // Predicated region
        $region17: #{tpu_custom_call.1} parent=11 // pred_check
          %p138 = pneg %p84
        $region18: #{tpu_custom_call.1} parent=11 // pred_check_branch
          %140 = sbr.rel (%p138) target = $region20
        $region19: #{tpu_custom_call.1} parent=11 // pred_region
          _
        $region20: #{tpu_custom_call.1} parent=11 // pred_fallthru
          _
      $region12: #{tpu_custom_call.1} parent=5 // pred_fallthru
        _
      %p141 = scmp.lt.s32.totalorder %s16, 2
      // Predicated region
      $region21: #{tpu_custom_call.1} parent=5 // pred_check
        %p142 = pneg %p141
      $region22: #{tpu_custom_call.1} parent=5 // pred_check_branch
        %144 = sbr.rel (%p142) target = $region24
      $region23: #{tpu_custom_call.1} parent=5 // pred_region
        // Predicated region
        $region25: #{tpu_custom_call.1} parent=23 // pred_check
          %p145 = pneg %p36
        $region26: #{tpu_custom_call.1} parent=23 // pred_check_branch
          %147 = sbr.rel (%p145) target = $region28
        $region27: #{tpu_custom_call.1} parent=23 // pred_region
          %s148 = sand.u32 %s26, 1
          %s149 = scalar_lea.sflag [#allocation3], %s148
          %s150 = sand.u32 %s26, 1
          %s151 = smul.addr %s150, 8
          %s152 = scalar_lea.vmem [#allocation2], %s151
          %s154 = ssub.s32 128, 128
          %155 = vsyncadd %s149, %s154
          %s156 = smul.addr %s16, 2
          %s157 = smul.addr %s156, 64
          %s158 = scalar_lea.hbm %s0, %s157
          %s159 = sshll.u32 %s152, 4
          %s160 = int_to_ptr.vmem [resolvable:$true] %s159
          %165 = dma.hbm_to_vmem [thread:$0]  %s158, 128, %s160, %s149, 64, 64, 4
        $region28: #{tpu_custom_call.1} parent=23 // pred_fallthru
          _
      $region24: #{tpu_custom_call.1} parent=5 // pred_fallthru
        _
      %p166 = scmp.le.s32.totalorder 1, %s16
      %p167 = scmp.lt.s32.totalorder %s16, 3
      %p168 = pnand %p166, %p167
      %p169 = pneg %p168
      // Predicated region
      $region29: #{tpu_custom_call.1} parent=5 // pred_check
        _
      $region30: #{tpu_custom_call.1} parent=5 // pred_check_branch
        %171 = sbr.rel (%p168) target = $region32
      $region31: #{tpu_custom_call.1} parent=5 // pred_region
        %s172 = ssub.s32 %s16, 1
        %s173 = sand.u32 %s29, 1
        %s174 = scalar_lea.sflag [#allocation3], %s173
        %s175 = sand.u32 %s29, 1
        %s176 = smul.addr %s175, 8
        %s177 = scalar_lea.vmem [#allocation2], %s176
        // Predicated region
        $region33: #{tpu_custom_call.1} parent=31 // pred_check
          %p178 = pneg %p42
        $region34: #{tpu_custom_call.1} parent=31 // pred_check_branch
          %180 = sbr.rel (%p178) target = $region36
        $region35: #{tpu_custom_call.1} parent=31 // pred_region
          %181 = dma.done %s174, 128
        $region36: #{tpu_custom_call.1} parent=31 // pred_fallthru
          _
        // Predicated region
        $region37: #{tpu_custom_call.1} parent=31 // pred_check
          %p182 = pneg %p63
        $region38: #{tpu_custom_call.1} parent=31 // pred_check_branch
          %184 = sbr.rel (%p182) target = $region40
        $region39: #{tpu_custom_call.1} parent=31 // pred_region
          %185 = dma.done [#allocation6], 256
        $region40: #{tpu_custom_call.1} parent=31 // pred_fallthru
          _
        %s186 = sand.u32 %s29, 1
        %s187 = scalar_lea.sflag [#allocation3], %s186
        %s188 = sand.u32 %s29, 1
        %s189 = smul.addr %s188, 8
        %s190 = scalar_lea.vmem [#allocation2], %s189
        %p191 = pneg %p42
        %p192 = pneg %p39
        %p193 = pneg %p63
        %p194 = pneg %p60
        %p195 = pneg %p84
        %p196 = pneg %p81
        %p197 = pneg %p110
        %p198 = pneg %p107
        %s199 = sand.u32 %s97, 1
        %s200 = scalar_lea.sflag [#allocation4], %s199
        %s201 = sand.u32 %s97, 1
        %s202 = scalar_lea.vmem [#allocation7], %s201
        %v204 = vld [vmem:[%s177] sm:$0xf]
        %v205 = vld [vmem:[%s177 + $0x4] sm:$0xf]
        %v206 = vld [vmem:[#allocation5] sm:$0xf]
        %v207 = vld [vmem:[#allocation5 + $0x4] sm:$0xf]
        %v208 = vld [vmem:[#allocation5 + $0x8] sm:$0xf]
        %v209 = vld [vmem:[#allocation5 + $0xc] sm:$0xf]
        %v212 = vunpack.c.l.b16 %v204
        %v213 = vunpack.c.l.b16 %v205
        %v214 = vpack.c.b16 %v213, %v212
        %v219 = vunpack.c.l.b16 %v206
        %v220 = vunpack.c.l.b16 %v207
        %v221 = vunpack.c.l.b16 %v208
        %v222 = vunpack.c.l.b16 %v209
        %v223 = vpack.c.b16 %v220, %v219
        %v224 = vpack.c.b16 %v222, %v221
        %vm227 = vcmask 261120
        %v229 = vsel %vm227, %v214, 0
        %231 = vmatprep.subr.bf16.mxu0 0
        %232 = vmatpush1.bf16.msra.mxu0 0
        %233 = vmatprep.subr.bf16.mxu0 0
        %234 = vmatpush1.bf16.msra.mxu0 0
        %235 = vmatprep.subr.bf16.mxu0 0
        %236 = vmatpush1.bf16.msra.mxu0 0
        %237 = vmatprep.subr.bf16.mxu0 0
        %238 = vmatpush1.bf16.msra.mxu0 0
        %239 = vmatprep.subr.bf16.mxu0 0
        %240 = vmatpush1.bf16.msra.mxu0 0
        %241 = vmatprep.subr.bf16.mxu0 0
        %242 = vmatpush1.bf16.msra.mxu0 0
        %243 = vmatprep.subr.bf16.mxu0 0
        %244 = vmatpush1.bf16.msra.mxu0 %v224
        %245 = vmatprep.subr.bf16.mxu0 0
        %246 = vmatpush1.bf16.msra.mxu0 %v223
        %247 = vmatprep.subr.bf16.mxu0 0
        %248 = vmatpush2.bf16.msra.mxu0 0
        %249 = vmatprep.subr.bf16.mxu0 0
        %250 = vmatpush2.bf16.msra.mxu0 0
        %251 = vmatprep.subr.bf16.mxu0 0
        %252 = vmatpush2.bf16.msra.mxu0 0
        %253 = vmatprep.subr.bf16.mxu0 0
        %254 = vmatpush2.bf16.msra.mxu0 0
        %255 = vmatprep.subr.bf16.mxu0 0
        %256 = vmatpush2.bf16.msra.mxu0 0
        %257 = vmatprep.subr.bf16.mxu0 0
        %258 = vmatpush2.bf16.msra.mxu0 0
        %259 = vmatprep.subr.bf16.mxu0 0
        %260 = vmatpush2.bf16.msra.mxu0 0
        %261 = vmatprep.subr.bf16.mxu0 0
        %262 = vmatpush2.bf16.msra.mxu0 0
        %263 = vmatprep.mubr.bf16.mxu0 0
        %264 = vmatmul.mubr.bf16.gmra.mxu0 %v229
        %v265 = vpop.f32.mrf.mxu0
        %v266 = vadd.f32 0.0, %v265
        %v267 = vpop.f32.mrf.mxu0
        %v268 = vpop.f32.mrf.mxu0
        %v269 = vadd.f32 0.0, %v268
        %v270 = vpop.f32.mrf.mxu0
        %271 = vdwg.mxu0
        %v272 = vtanh.pop %v266
        %v273 = vtanh.pop %v269
        %v274 = vld [vmem:[%s2] sm:$0x1]
        %v276 = vlaneseq
        %v277 = vshrl.u32 %v276, 7
        %v278 = vsub.s32 0, %v277
        %v279 = vrot.slane %v274, %v278
        %v281 = vmul.f32 %v272, %v279
        %v282 = vmul.f32 %v273, %v279
        %v283 = vsel %vm227, %v281, 0.0
        %284 = vadd.xlane.f32.xlu0 %v283
        %v285 = vpop.xlane.xlu0 %284
        %v286 = vsel %vm227, %v282, 0.0
        %287 = vadd.xlane.f32.xlu0 %v286
        %v288 = vpop.xlane.xlu0 %287
        %v289 = vlaneseq
        %v290 = vand.u32 %v289, 127
        %vm291 = vcmp.lt.s32.totalorder %v290, 8
        %v294 = vlaneseq
        %v295 = vshrl.u32 %v294, 7
        %v296 = vsub.s32 %v290, %v295
        %v297 = vrot.slane %v285, %v296
        %v298 = vadd.s32 %v290, 4294967288
        %v299 = vlaneseq
        %v300 = vshrl.u32 %v299, 7
        %v301 = vsub.s32 %v298, %v300
        %v302 = vrot.slane %v288, %v301
        %vm303 = vcmask 130112
        %v304 = vsel %vm303, %v302, %v297
        %v306 = vsel %vm291, %v304, -inf
        %vm307 = vcmask 122880
        %v308 = vsel %vm307, %v306, -inf
        %309 = vmax.xlane.f32.xlu0 %v308
        %v310 = vpop.xlane.xlu0 %309
        %v311 = vsub.f32 %v306, %v310
        %v312 = vmul.f32 %v311, 1.442695
        %v313 = vpow.pop %v312
        %v314 = vsel %vm307, %v313, 0.0
        %315 = vadd.xlane.f32.xlu0 %v314
        %v316 = vpop.xlane.xlu0 %315
        %v317 = vrcp.pop %v316
        %v318 = vmul.f32 %v313, %v317
        %v319 = vunpack.c.l.bf16 %v204
        %v320 = vunpack.c.l.bf16 %v205
        %v321 = vlaneseq
        %v322 = vshrl.u32 %v321, 7
        %v323 = vsub.s32 0, %v322
        %v324 = vrot.slane %v318, %v323
        %326 = vbcast.lane.b32.xlu0 %v324, 256
        %v327 = vpop.permute.xlu0 %326
        %s329 = sor.u32 256, 8
        %330 = vbcast.lane.b32.xlu0 %v324, %s329
        %v331 = vpop.permute.xlu0 %330
        %v332 = vmul.f32 %v319, %v327
        %v333 = vmul.f32 %v320, %v331
        %v334 = vsel %vm227, %v332, 0.0
        %v335 = vsel %vm227, %v333, 0.0
        %v336 = vadd.f32 %v334, %v335
        %v337 = vrot.slane %v336, 4
        %v338 = vadd.f32 %v336, %v337
        %v339 = vrot.slane %v338, 2
        %v340 = vadd.f32 %v338, %v339
        %v341 = vrot.slane %v340, 1
        %v342 = vadd.f32 %v340, %v341
        %vm343 = vcmask 253952
        %344 = vst.msk [vmem:[%s202] sm:$0x1] %vm343, %v342
        %s345 = sand.u32 %s97, 1
        %s346 = scalar_lea.sflag [#allocation4], %s345
        %s347 = sand.u32 %s97, 1
        %s348 = scalar_lea.vmem [#allocation7], %s347
        // Predicated region
        $region41: #{tpu_custom_call.1} parent=31 // pred_check
          %p349 = pneg %p107
        $region42: #{tpu_custom_call.1} parent=31 // pred_check_branch
          %351 = sbr.rel (%p349) target = $region44
        $region43: #{tpu_custom_call.1} parent=31 // pred_region
          %s353 = ssub.s32 16, 16
          %354 = vsyncadd %s346, %s353
          %s355 = smul.addr %s21, 16
          %s356 = scalar_lea.hbm %s3, %s355
          %s358 = sshll.u32 %s348, 4
          %s359 = int_to_ptr.vmem [resolvable:$true] %s358
          %361 = dma.vmem_to_hbm [thread:$0]  %s359, 16, %s356, %s346
        $region44: #{tpu_custom_call.1} parent=31 // pred_fallthru
          _
      $region32: #{tpu_custom_call.1} parent=5 // pred_fallthru
        _
      %p362 = scmp.le.s32.totalorder 2, %s16
      // Predicated region
      $region45: #{tpu_custom_call.1} parent=5 // pred_check
        %p363 = pneg %p362
      $region46: #{tpu_custom_call.1} parent=5 // pred_check_branch
        %365 = sbr.rel (%p363) target = $region48
      $region47: #{tpu_custom_call.1} parent=5 // pred_region
        %s366 = ssub.s32 %s16, 2
        // Predicated region
        $region49: #{tpu_custom_call.1} parent=47 // pred_check
          %p367 = pneg %p113
        $region50: #{tpu_custom_call.1} parent=47 // pred_check_branch
          %369 = sbr.rel (%p367) target = $region52
        $region51: #{tpu_custom_call.1} parent=47 // pred_region
          %s370 = sand.u32 %s98, 1
          %s371 = scalar_lea.sflag [#allocation4], %s370
          %s372 = sand.u32 %s98, 1
          %s373 = scalar_lea.vmem [#allocation7], %s372
          %374 = dma.done %s371, 16
        $region52: #{tpu_custom_call.1} parent=47 // pred_fallthru
          _
      $region48: #{tpu_custom_call.1} parent=5 // pred_fallthru
        _
    $region6: #{tpu_custom_call.1} parent=1 // loop_footer
      %s20 = sadd.s32 1, %s16
    $region7: #{tpu_custom_call.1} parent=1 // loop_footer_branch
      %15 = sbr.rel target = $region3
    $region8: #{tpu_custom_call.1} parent=1 // loop_exit
      _
    %375 = vsyncpa [#allocation3], 1
    %s376 = scalar_lea.sflag [#allocation3], 1
    %377 = vsyncpa %s376, 1
    %378 = vsyncpa [#allocation6], 1
    %379 = vsyncpa [#allocation4], 1
    %s380 = scalar_lea.sflag [#allocation4], 1
    %381 = vsyncpa %s380, 1

// kernel: tpu_custom_call.1
$region0: #{tpu_custom_call.1}
  #allocation0 [shape = 'u32[]', space=smem, size = 0x4, offset = 0x4, fixed_abs, tag = 'smem constant byte address 0x4 - core index']
  #allocation1 [shape = 'u32[144,128]{1,0:T(1,128)}', space=vmem, size = 0x12000, scoped, tag = 'internal scratch']
  %s0 = inlined_call_operand.hbm [shape: bf16[2,16,32], index: 0, kind: input, shape index: {}]
  %s1 = inlined_call_operand.hbm [shape: bf16[32,32], index: 1, kind: input, shape index: {}]
  %s2 = inlined_call_operand.vmem [shape: f32[1,32], index: 2, kind: input, shape index: {}]
  %s3 = inlined_call_operand.hbm [shape: f32[2,1,32], index: 3, kind: output, shape index: {}]
  %s4 = sld [smem:[#allocation0]]
  $region53: #{tpu_custom_call.1} parent=0
    _
  %s6 = ssub.s32 1, %s4
  %s7 = scalar_select 0, %s6, %s4
  $region1: #{tpu_custom_call.1} parent=0
    #allocation2 [shape = 'u8[8192]{0}', space=vmem, size = 0x2000, scoped, tag = 'input window, operand 0']
    #allocation3 [shape = 's32[2]{0}', space=sflag, size = 0x8, scoped, tag = 'scoped memory for tpu_custom_call.1']
    #allocation4 [shape = 's32[2]{0}', space=sflag, size = 0x8, scoped, tag = 'scoped memory for tpu_custom_call.1']
    #allocation5 [shape = 'u8[8192]{0}', space=vmem, size = 0x2000, scoped, tag = 'input window, operand 1, single buffered']
    #allocation6 [shape = 's32[1]{0}', space=sflag, size = 0x4, scoped, tag = 'scoped memory for tpu_custom_call.1']
    #allocation7 [shape = 'u8[1024]{0}', space=vmem, size = 0x400, scoped, tag = 'output window, operand 0']
    %8 = vsyncpa [#allocation3], 0
    %s9 = scalar_lea.sflag [#allocation3], 1
    %10 = vsyncpa %s9, 0
    %11 = vsyncpa [#allocation6], 0
    %12 = vsyncpa [#allocation4], 0
    %s13 = scalar_lea.sflag [#allocation4], 1
    %14 = vsyncpa %s13, 0
    loop: start=0, step=1, limit=4
    $region2: #{tpu_custom_call.1} parent=1 // loop_pre_header
      _
    $region3: #{tpu_custom_call.1} parent=1 // loop_header
      %s16 = sphi 0, %s20
      %p17 = scmp.ge.s32.totalorder %s16, 4
      %s26 = sphi 0, %s28
      %s29 = sphi 0, %s26
      %s30 = sphi 0, %s29
      %s46 = sphi 0, %s30
      %s50 = sphi 0, %s50
      %s52 = sphi 0, %s50
      %s53 = sphi 0, %s52
      %s67 = sphi 0, %s53
      %s71 = sphi 0, %s71
      %s73 = sphi 0, %s71
      %s74 = sphi 0, %s73
      %s88 = sphi 0, %s74
      %s94 = sphi 0, %s96
      %s97 = sphi 0, %s94
      %s98 = sphi 0, %s97
      %s114 = sphi 0, %s98
    $region4: #{tpu_custom_call.1} parent=1 // loop_header_branch
      %19 = sbr.rel (%p17) target = $region8
    $region5: #{tpu_custom_call.1} parent=1 // loop_body
      %s21 = ssub.s32 %s16, 1
      %s22 = ssub.s32 %s16, 2
      %s23 = sadd.s32 %s16, 1
      %s24 = ssub.s32 %s16, %s23
      %p25 = scmp.eq.s32.totalorder %s24, 0
      %s27 = sadd.s32 %s26, 1
      %s28 = scalar_select %p25, %s26, %s27
      %p31 = pneg %p25
      %p32 = scmp.eq.s32.totalorder %s16, 1
      %p33 = por %p31, %p32
      %p34 = scmp.ne.s32.totalorder %s26, %s29
      %p35 = scmp.eq.s32.totalorder %s16, 0
      %p36 = por %p34, %p35
      %p37 = scmp.ne.s32.totalorder %s26, %s29
      %p38 = scmp.eq.s32.totalorder %s21, 1
      %p39 = por %p37, %p38
      %p40 = scmp.ne.s32.totalorder %s29, %s30
      %p41 = scmp.eq.s32.totalorder %s21, 0
      %p42 = por %p40, %p41
      %p43 = scmp.ne.s32.totalorder %s29, %s30
      %p44 = scmp.eq.s32.totalorder %s22, 1
      %p45 = por %p43, %p44
      %p47 = scmp.ne.s32.totalorder %s30, %s46
      %p48 = scmp.eq.s32.totalorder %s22, 0
      %p49 = por %p47, %p48
      %s51 = sadd.s32 %s50, 1
      %p54 = scmp.eq.s32.totalorder %s16, 1
      %p55 = scmp.ne.s32.totalorder %s50, %s52
      %p56 = scmp.eq.s32.totalorder %s16, 0
      %p57 = por %p55, %p56
      %p58 = scmp.ne.s32.totalorder %s50, %s52
      %p59 = scmp.eq.s32.totalorder %s21, 1
      %p60 = por %p58, %p59
      %p61 = scmp.ne.s32.totalorder %s52, %s53
      %p62 = scmp.eq.s32.totalorder %s21, 0
      %p63 = por %p61, %p62
      %p64 = scmp.ne.s32.totalorder %s52, %s53
      %p65 = scmp.eq.s32.totalorder %s22, 1
      %p66 = por %p64, %p65
      %p68 = scmp.ne.s32.totalorder %s53, %s67
      %p69 = scmp.eq.s32.totalorder %s22, 0
      %p70 = por %p68, %p69
      %s72 = sadd.s32 %s71, 1
      %p75 = scmp.eq.s32.totalorder %s16, 1
      %p76 = scmp.ne.s32.totalorder %s71, %s73
      %p77 = scmp.eq.s32.totalorder %s16, 0
      %p78 = por %p76, %p77
      %p79 = scmp.ne.s32.totalorder %s71, %s73
      %p80 = scmp.eq.s32.totalorder %s21, 1
      %p81 = por %p79, %p80
      %p82 = scmp.ne.s32.totalorder %s73, %s74
      %p83 = scmp.eq.s32.totalorder %s21, 0
      %p84 = por %p82, %p83
      %p85 = scmp.ne.s32.totalorder %s73, %s74
      %p86 = scmp.eq.s32.totalorder %s22, 1
      %p87 = por %p85, %p86
      %p89 = scmp.ne.s32.totalorder %s74, %s88
      %p90 = scmp.eq.s32.totalorder %s22, 0
      %p91 = por %p89, %p90
      %s92 = ssub.s32 %s16, %s23
      %p93 = scmp.eq.s32.totalorder %s92, 0
      %s95 = sadd.s32 %s94, 1
      %s96 = scalar_select %p93, %s94, %s95
      %p99 = pneg %p93
      %p100 = scmp.eq.s32.totalorder %s16, 1
      %p101 = por %p99, %p100
      %p102 = scmp.ne.s32.totalorder %s94, %s97
      %p103 = scmp.eq.s32.totalorder %s16, 0
      %p104 = por %p102, %p103
      %p105 = scmp.ne.s32.totalorder %s94, %s97
      %p106 = scmp.eq.s32.totalorder %s21, 1
      %p107 = por %p105, %p106
      %p108 = scmp.ne.s32.totalorder %s97, %s98
      %p109 = scmp.eq.s32.totalorder %s21, 0
      %p110 = por %p108, %p109
      %p111 = scmp.ne.s32.totalorder %s97, %s98
      %p112 = scmp.eq.s32.totalorder %s22, 1
      %p113 = por %p111, %p112
      %p115 = scmp.ne.s32.totalorder %s98, %s114
      %p116 = scmp.eq.s32.totalorder %s22, 0
      %p117 = por %p115, %p116
      %p118 = scmp.le.s32.totalorder 1, %s16
      %p119 = scmp.lt.s32.totalorder %s16, 3
      %p120 = pnand %p118, %p119
      %p121 = pneg %p120
      // Predicated region
      $region9: #{tpu_custom_call.1} parent=5 // pred_check
        _
      $region10: #{tpu_custom_call.1} parent=5 // pred_check_branch
        %123 = sbr.rel (%p120) target = $region12
      $region11: #{tpu_custom_call.1} parent=5 // pred_region
        %s124 = ssub.s32 %s16, 1
        // Predicated region
        $region13: #{tpu_custom_call.1} parent=11 // pred_check
          %p125 = pneg %p63
        $region14: #{tpu_custom_call.1} parent=11 // pred_check_branch
          %127 = sbr.rel (%p125) target = $region16
        $region15: #{tpu_custom_call.1} parent=11 // pred_region
          %s129 = ssub.s32 256, 256
          %130 = vsyncadd [#allocation6], %s129
          %s131 = sshll.u32 [#allocation5], 4
          %s132 = int_to_ptr.vmem [resolvable:$true] %s131
          %137 = dma.hbm_to_vmem [thread:$0]  %s1, 256, %s132, [#allocation6], 64, 64, 4
        $region16: #{tpu_custom_call.1} parent=11 // pred_fallthru
          _
        // Predicated region
        $region17: #{tpu_custom_call.1} parent=11 // pred_check
          %p138 = pneg %p84
        $region18: #{tpu_custom_call.1} parent=11 // pred_check_branch
          %140 = sbr.rel (%p138) target = $region20
        $region19: #{tpu_custom_call.1} parent=11 // pred_region
          _
        $region20: #{tpu_custom_call.1} parent=11 // pred_fallthru
          _
      $region12: #{tpu_custom_call.1} parent=5 // pred_fallthru
        _
      %p141 = scmp.lt.s32.totalorder %s16, 2
      // Predicated region
      $region21: #{tpu_custom_call.1} parent=5 // pred_check
        %p142 = pneg %p141
      $region22: #{tpu_custom_call.1} parent=5 // pred_check_branch
        %144 = sbr.rel (%p142) target = $region24
      $region23: #{tpu_custom_call.1} parent=5 // pred_region
        // Predicated region
        $region25: #{tpu_custom_call.1} parent=23 // pred_check
          %p145 = pneg %p36
        $region26: #{tpu_custom_call.1} parent=23 // pred_check_branch
          %147 = sbr.rel (%p145) target = $region28
        $region27: #{tpu_custom_call.1} parent=23 // pred_region
          %s148 = sand.u32 %s26, 1
          %s149 = scalar_lea.sflag [#allocation3], %s148
          %s150 = sand.u32 %s26, 1
          %s151 = smul.addr %s150, 8
          %s152 = scalar_lea.vmem [#allocation2], %s151
          %s154 = ssub.s32 128, 128
          %155 = vsyncadd %s149, %s154
          %s156 = smul.addr %s16, 2
          %s157 = smul.addr %s156, 64
          %s158 = scalar_lea.hbm %s0, %s157
          %s159 = sshll.u32 %s152, 4
          %s160 = int_to_ptr.vmem [resolvable:$true] %s159
          %165 = dma.hbm_to_vmem [thread:$0]  %s158, 128, %s160, %s149, 64, 64, 4
        $region28: #{tpu_custom_call.1} parent=23 // pred_fallthru
          _
      $region24: #{tpu_custom_call.1} parent=5 // pred_fallthru
        _
      %p166 = scmp.le.s32.totalorder 1, %s16
      %p167 = scmp.lt.s32.totalorder %s16, 3
      %p168 = pnand %p166, %p167
      %p169 = pneg %p168
      // Predicated region
      $region29: #{tpu_custom_call.1} parent=5 // pred_check
        _
      $region30: #{tpu_custom_call.1} parent=5 // pred_check_branch
        %171 = sbr.rel (%p168) target = $region32
      $region31: #{tpu_custom_call.1} parent=5 // pred_region
        %s172 = ssub.s32 %s16, 1
        %s173 = sand.u32 %s29, 1
        %s174 = scalar_lea.sflag [#allocation3], %s173
        %s175 = sand.u32 %s29, 1
        %s176 = smul.addr %s175, 8
        %s177 = scalar_lea.vmem [#allocation2], %s176
        // Predicated region
        $region33: #{tpu_custom_call.1} parent=31 // pred_check
          %p178 = pneg %p42
        $region34: #{tpu_custom_call.1} parent=31 // pred_check_branch
          %180 = sbr.rel (%p178) target = $region36
        $region35: #{tpu_custom_call.1} parent=31 // pred_region
          %181 = dma.done %s174, 128
        $region36: #{tpu_custom_call.1} parent=31 // pred_fallthru
          _
        // Predicated region
        $region37: #{tpu_custom_call.1} parent=31 // pred_check
          %p182 = pneg %p63
        $region38: #{tpu_custom_call.1} parent=31 // pred_check_branch
          %184 = sbr.rel (%p182) target = $region40
        $region39: #{tpu_custom_call.1} parent=31 // pred_region
          %185 = dma.done [#allocation6], 256
        $region40: #{tpu_custom_call.1} parent=31 // pred_fallthru
          _
        %s186 = sand.u32 %s29, 1
        %s187 = scalar_lea.sflag [#allocation3], %s186
        %s188 = sand.u32 %s29, 1
        %s189 = smul.addr %s188, 8
        %s190 = scalar_lea.vmem [#allocation2], %s189
        %p191 = pneg %p42
        %p192 = pneg %p39
        %p193 = pneg %p63
        %p194 = pneg %p60
        %p195 = pneg %p84
        %p196 = pneg %p81
        %p197 = pneg %p110
        %p198 = pneg %p107
        %s199 = sand.u32 %s97, 1
        %s200 = scalar_lea.sflag [#allocation4], %s199
        %s201 = sand.u32 %s97, 1
        %s202 = scalar_lea.vmem [#allocation7], %s201
        %v204 = vld [vmem:[%s177] sm:$0xf]
        %v205 = vld [vmem:[%s177 + $0x4] sm:$0xf]
        %v206 = vld [vmem:[#allocation5] sm:$0xf]
        %v207 = vld [vmem:[#allocation5 + $0x4] sm:$0xf]
        %v208 = vld [vmem:[#allocation5 + $0x8] sm:$0xf]
        %v209 = vld [vmem:[#allocation5 + $0xc] sm:$0xf]
        %v212 = vunpack.c.l.b16 %v204
        %v213 = vunpack.c.l.b16 %v205
        %v214 = vpack.c.b16 %v213, %v212
        %v219 = vunpack.c.l.b16 %v206
        %v220 = vunpack.c.l.b16 %v207
        %v221 = vunpack.c.l.b16 %v208
        %v222 = vunpack.c.l.b16 %v209
        %v223 = vpack.c.b16 %v220, %v219
        %v224 = vpack.c.b16 %v222, %v221
        %vm227 = vcmask 261120
        %v229 = vsel %vm227, %v214, 0
        %231 = vmatprep.subr.bf16.mxu0 0
        %232 = vmatpush1.bf16.msra.mxu0 0
        %233 = vmatprep.subr.bf16.mxu0 0
        %234 = vmatpush1.bf16.msra.mxu0 0
        %235 = vmatprep.subr.bf16.mxu0 0
        %236 = vmatpush1.bf16.msra.mxu0 0
        %237 = vmatprep.subr.bf16.mxu0 0
        %238 = vmatpush1.bf16.msra.mxu0 0
        %239 = vmatprep.subr.bf16.mxu0 0
        %240 = vmatpush1.bf16.msra.mxu0 0
        %241 = vmatprep.subr.bf16.mxu0 0
        %242 = vmatpush1.bf16.msra.mxu0 0
        %243 = vmatprep.subr.bf16.mxu0 0
        %244 = vmatpush1.bf16.msra.mxu0 %v224
        %245 = vmatprep.subr.bf16.mxu0 0
        %246 = vmatpush1.bf16.msra.mxu0 %v223
        %247 = vmatprep.subr.bf16.mxu0 0
        %248 = vmatpush2.bf16.msra.mxu0 0
        %249 = vmatprep.subr.bf16.mxu0 0
        %250 = vmatpush2.bf16.msra.mxu0 0
        %251 = vmatprep.subr.bf16.mxu0 0
        %252 = vmatpush2.bf16.msra.mxu0 0
        %253 = vmatprep.subr.bf16.mxu0 0
        %254 = vmatpush2.bf16.msra.mxu0 0
        %255 = vmatprep.subr.bf16.mxu0 0
        %256 = vmatpush2.bf16.msra.mxu0 0
        %257 = vmatprep.subr.bf16.mxu0 0
        %258 = vmatpush2.bf16.msra.mxu0 0
        %259 = vmatprep.subr.bf16.mxu0 0
        %260 = vmatpush2.bf16.msra.mxu0 0
        %261 = vmatprep.subr.bf16.mxu0 0
        %262 = vmatpush2.bf16.msra.mxu0 0
        %263 = vmatprep.mubr.bf16.mxu0 0
        %264 = vmatmul.mubr.bf16.gmra.mxu0 %v229
        %v265 = vpop.f32.mrf.mxu0
        %v266 = vadd.f32 0.0, %v265
        %v267 = vpop.f32.mrf.mxu0
        %v268 = vpop.f32.mrf.mxu0
        %v269 = vadd.f32 0.0, %v268
        %v270 = vpop.f32.mrf.mxu0
        %271 = vdwg.mxu0
        %v272 = vtanh.pop %v266
        %v273 = vtanh.pop %v269
        %v274 = vld [vmem:[%s2] sm:$0x1]
        %v276 = vlaneseq
        %v277 = vshrl.u32 %v276, 7
        %v278 = vsub.s32 0, %v277
        %v279 = vrot.slane %v274, %v278
        %v281 = vmul.f32 %v272, %v279
        %v282 = vmul.f32 %v273, %v279
        %v283 = vsel %vm227, %v281, 0.0
        %284 = vadd.xlane.f32.xlu0 %v283
        %v285 = vpop.xlane.xlu0 %284
        %v286 = vsel %vm227, %v282, 0.0
        %287 = vadd.xlane.f32.xlu0 %v286
        %v288 = vpop.xlane.xlu0 %287
        %v289 = vlaneseq
        %v290 = vand.u32 %v289, 127
        %vm291 = vcmp.lt.s32.totalorder %v290, 8
        %v294 = vlaneseq
        %v295 = vshrl.u32 %v294, 7
        %v296 = vsub.s32 %v290, %v295
        %v297 = vrot.slane %v285, %v296
        %v298 = vadd.s32 %v290, 4294967288
        %v299 = vlaneseq
        %v300 = vshrl.u32 %v299, 7
        %v301 = vsub.s32 %v298, %v300
        %v302 = vrot.slane %v288, %v301
        %vm303 = vcmask 130112
        %v304 = vsel %vm303, %v302, %v297
        %v306 = vsel %vm291, %v304, -inf
        %vm307 = vcmask 122880
        %v308 = vsel %vm307, %v306, -inf
        %309 = vmax.xlane.f32.xlu0 %v308
        %v310 = vpop.xlane.xlu0 %309
        %v311 = vsub.f32 %v306, %v310
        %v312 = vmul.f32 %v311, 1.442695
        %v313 = vpow.pop %v312
        %v314 = vsel %vm307, %v313, 0.0
        %315 = vadd.xlane.f32.xlu0 %v314
        %v316 = vpop.xlane.xlu0 %315
        %v317 = vrcp.pop %v316
        %v318 = vmul.f32 %v313, %v317
        %v319 = vunpack.c.l.bf16 %v204
        %v320 = vunpack.c.l.bf16 %v205
        %v321 = vlaneseq
        %v322 = vshrl.u32 %v321, 7
        %v323 = vsub.s32 0, %v322
        %v324 = vrot.slane %v318, %v323
        %326 = vbcast.lane.b32.xlu0 %v324, 256
        %v327 = vpop.permute.xlu0 %326
        %s329 = sor.u32 256, 8
        %330 = vbcast.lane.b32.xlu0 %v324, %s329
        %v331 = vpop.permute.xlu0 %330
        %v332 = vmul.f32 %v319, %v327
        %v333 = vmul.f32 %v320, %v331
        %v334 = vsel %vm227, %v332, 0.0
        %v335 = vsel %vm227, %v333, 0.0
        %v336 = vadd.f32 %v334, %v335
        %v337 = vrot.slane %v336, 4
        %v338 = vadd.f32 %v336, %v337
        %v339 = vrot.slane %v338, 2
        %v340 = vadd.f32 %v338, %v339
        %v341 = vrot.slane %v340, 1
        %v342 = vadd.f32 %v340, %v341
        %vm343 = vcmask 253952
        %344 = vst.msk [vmem:[%s202] sm:$0x1] %vm343, %v342
        %s345 = sand.u32 %s97, 1
        %s346 = scalar_lea.sflag [#allocation4], %s345
        %s347 = sand.u32 %s97, 1
        %s348 = scalar_lea.vmem [#allocation7], %s347
        // Predicated region
        $region41: #{tpu_custom_call.1} parent=31 // pred_check
          %p349 = pneg %p107
        $region42: #{tpu_custom_call.1} parent=31 // pred_check_branch
          %351 = sbr.rel (%p349) target = $region44
        $region43: #{tpu_custom_call.1} parent=31 // pred_region
          %s353 = ssub.s32 16, 16
          %354 = vsyncadd %s346, %s353
          %s355 = smul.addr %s21, 16
          %s356 = scalar_lea.hbm %s3, %s355
          %s358 = sshll.u32 %s348, 4
          %s359 = int_to_ptr.vmem [resolvable:$true] %s358
          %361 = dma.vmem_to_hbm [thread:$0]  %s359, 16, %s356, %s346
        $region44: #{tpu_custom_call.1} parent=31 // pred_fallthru
          _
      $region32: #{tpu_custom_call.1} parent=5 // pred_fallthru
        _
      %p362 = scmp.le.s32.totalorder 2, %s16
      // Predicated region
      $region45: #{tpu_custom_call.1} parent=5 // pred_check
        %p363 = pneg %p362
      $region46: #{tpu_custom_call.1} parent=5 // pred_check_branch
        %365 = sbr.rel (%p363) target = $region48
      $region47: #{tpu_custom_call.1} parent=5 // pred_region
        %s366 = ssub.s32 %s16, 2
        // Predicated region
        $region49: #{tpu_custom_call.1} parent=47 // pred_check
          %p367 = pneg %p113
        $region50: #{tpu_custom_call.1} parent=47 // pred_check_branch
          %369 = sbr.rel (%p367) target = $region52
        $region51: #{tpu_custom_call.1} parent=47 // pred_region
          %s370 = sand.u32 %s98, 1
          %s371 = scalar_lea.sflag [#allocation4], %s370
          %s372 = sand.u32 %s98, 1
          %s373 = scalar_lea.vmem [#allocation7], %s372
          %374 = dma.done %s371, 16
        $region52: #{tpu_custom_call.1} parent=47 // pred_fallthru
          _
      $region48: #{tpu_custom_call.1} parent=5 // pred_fallthru
        _
    $region6: #{tpu_custom_call.1} parent=1 // loop_footer
      %s20 = sadd.s32 1, %s16
    $region7: #{tpu_custom_call.1} parent=1 // loop_footer_branch
      %15 = sbr.rel target = $region3
    $region8: #{tpu_custom_call.1} parent=1 // loop_exit
      _
    %375 = vsyncpa [#allocation3], 1
    %s376 = scalar_lea.sflag [#allocation3], 1
    %377 = vsyncpa %s376, 1
    %378 = vsyncpa [#allocation6], 1
    %379 = vsyncpa [#allocation4], 1
    %s380 = scalar_lea.sflag [#allocation4], 1
    %381 = vsyncpa %s380, 1

</llo_original>
